<compile_context>
chip_gen: v7x
topology: tpu7x:2x2x1
jax: 0.10.0
libtpu: 0.0.40
codegen_flags: <defaults>
</compile_context>

<pallas_src>
import functools

import numpy as np
import jax
import jax.numpy as jnp
from jax.experimental import pallas as pl
from jax.experimental.pallas import tpu as pltpu


def _wavelet_kernel(x_ref, w_ref, s_ref, g_ref, o_ref, *, use_layernorm, eps):
    """Conv-as-Toeplitz-matmul + segmented LayerNorm + gamma gate.

    x_ref: VMEM (TR, L)        rows = slice of N*c_in, unpadded time on lanes
    w_ref: VMEM (L, F*ws)      Toeplitz conv matrix (reflection baked in)
    s_ref: VMEM (F*ws, F*ws)   block-diagonal per-channel averaging matrix
    g_ref: VMEM (1, F*ws)      gamma, repeated per channel segment
    o_ref: VMEM (TR, F*ws)     lane-dense output
    """
    x = x_ref[...]                                                   # (TR, L)
    acc = jnp.dot(x, w_ref[...], preferred_element_type=jnp.float32)  # (TR, F*ws)

    if use_layernorm:
        s = s_ref[...]
        mean = jnp.dot(acc, s, preferred_element_type=jnp.float32)   # seg mean
        cent = acc - mean
        var = jnp.dot(cent * cent, s, preferred_element_type=jnp.float32)
        acc = cent * jax.lax.rsqrt(var + eps)

    o_ref[...] = (acc * g_ref[...]).astype(o_ref.dtype)


def _reflect_onehot(ws, length, pad):
    """(ws, ws, length) one-hot: output pos t, tap j reads x[reflect(t+j-pad)].

    Matches PyTorch ReflectionPad2d / np.pad(mode='reflect') (no edge repeat).
    Static (shape-only) -> plain numpy, constant-folded under jit.
    """
    idx = np.empty((ws, ws), np.int64)
    for t in range(ws):
        for j in range(ws):
            m = t + j - pad
            if m < 0:
                m = -m
            elif m >= length:
                m = 2 * length - 2 - m
            idx[t, j] = m
    return (idx[:, :, None] == np.arange(length)[None, None, :]).astype(np.float32)


@functools.partial(jax.jit, static_argnames=("windowsize", "use_layernorm", "eps"))
def model_builder_forward(x, w, gamma, *, windowsize, use_layernorm=True,
                          eps=1e-5):
    """Equivalent of model_builder.forward with Identity backbone.

    x:     (N, 1, input_length, c_in)  float32  (PyTorch NCHW)
    w:     (f_in, windowsize)          conv filters (squeezed (f_in,1,1,ws))
    gamma: (f_in,)                     squeezed (1, f_in, 1, 1) parameter
    returns (N, f_in, windowsize, c_in)
    """
    n, one, length, c_in = x.shape
    assert one == 1
    f_in, ws = w.shape
    assert ws == windowsize
    pad = (ws - 1) // 2 if ws % 2 == 1 else ws // 2
    # need at least ws valid conv positions after padding (matches [:ws] slice)
    assert length + 2 * pad - ws + 1 >= ws
    r = n * c_in
    m = f_in * ws

    # x (N,1,L,C) -> rows (R = N*C, L); time on lanes.
    x_rows = jnp.transpose(x, (0, 1, 3, 2)).reshape(r, length).astype(jnp.float32)

    # Toeplitz conv matrix with reflect padding baked in:
    #   W[l, k*ws + t] = sum_j w[k, j] * [reflect(t + j - pad) == l]
    onehot = _reflect_onehot(ws, length, pad)                 # static numpy
    w_toep = jnp.einsum("kj,tjl->lkt", w.astype(jnp.float32), onehot)
    w_toep = w_toep.reshape(length, m)

    # Block-diagonal averaging matrix for per-channel LayerNorm(ws).
    s_avg = jnp.asarray(np.kron(np.eye(f_in, dtype=np.float32),
                                np.full((ws, ws), 1.0 / ws, np.float32)))

    # gamma broadcast along each channel's ws-lane segment.
    gamma_vec = jnp.repeat(gamma.astype(jnp.float32), ws).reshape(1, m)

    # Row tiling only matters at production sizes (v7x VMEM budget); at the
    # toy size this collapses to a single grid step.
    row_tile = r
    grid_rows = 1
    max_rows = 512
    if r > max_rows and r % max_rows == 0:
        row_tile = max_rows
        grid_rows = r // max_rows

    kernel = functools.partial(_wavelet_kernel, use_layernorm=use_layernorm,
                               eps=eps)

    out = pl.pallas_call(
        kernel,
        out_shape=jax.ShapeDtypeStruct((r, m), jnp.float32),
        grid=(grid_rows,),
        in_specs=[
            pl.BlockSpec((row_tile, length), lambda i: (i, 0)),   # x rows
            pl.BlockSpec((length, m), lambda i: (0, 0)),          # Toeplitz W
            pl.BlockSpec((m, m), lambda i: (0, 0)),               # LN averager
            pl.BlockSpec((1, m), lambda i: (0, 0)),               # gamma
        ],
        out_specs=pl.BlockSpec((row_tile, m), lambda i: (i, 0)),
        compiler_params=pltpu.CompilerParams(
            dimension_semantics=("parallel",)),
    )(x_rows, w_toep, s_avg, gamma_vec)

    # (R, F*ws) -> (N, C, F, ws) -> (N, F, ws, C)  (PyTorch output layout)
    out = out.reshape(n, c_in, f_in, ws)
    out = jnp.transpose(out, (0, 2, 3, 1))
    # model_type='none' -> Identity head
    return out


def _reference(x, w, gamma, *, windowsize, use_layernorm=True, eps=1e-5):
    """Pure-JAX reference mirroring the PyTorch forward, for verification."""
    n, _, length, c_in = x.shape
    f_in, ws = w.shape
    pad = (ws - 1) // 2 if ws % 2 == 1 else ws // 2
    xt = jnp.transpose(x, (0, 1, 3, 2))
    xp = jnp.pad(xt, ((0, 0), (0, 0), (0, 0), (pad, pad)), mode="reflect")
    win = jnp.stack([xp[..., t:t + ws] for t in range(ws)], axis=-2)
    conv = jnp.einsum("nzctj,kj->nkct", win, w)              # (N,f_in,C,ws)
    if use_layernorm:
        mean = conv.mean(-1, keepdims=True)
        var = ((conv - mean) ** 2).mean(-1, keepdims=True)
        conv = (conv - mean) / jnp.sqrt(var + eps)
    y = jnp.transpose(conv, (0, 1, 3, 2))                    # (N,f_in,ws,C)
    return y * gamma.reshape(1, f_in, 1, 1)


if __name__ == "__main__":
    # args: windowsize = input_length = 16, c_in = 8, f_in = 4, batch = 2
    N, F_IN, WS, C_IN = 2, 4, 16, 8

    key = jax.random.PRNGKey(0)
    kx, kw = jax.random.split(key)

    # Deterministic parameter init:
    #   channel 0 = raw delta filter at ws//2 (module's raw_filter);
    #   remaining channels = deterministic pseudo-wavelet taps.
    # TODO(synk): PrepareWavelets/FiltersExtention source not provided; the
    # wavelet bank is synthesized deterministically instead of pywt wavelets.
    w = jax.random.normal(kw, (F_IN, WS), dtype=jnp.float32) * 0.1
    w = w.at[0].set(jnp.zeros((WS,), jnp.float32).at[WS // 2].set(1.0))

    # gamma parameter init: zeros with gamma[0,0,0,0] = 1
    gamma = jnp.zeros((F_IN,), jnp.float32).at[0].set(1.0)

    x = jax.random.normal(kx, (N, 1, WS, C_IN), dtype=jnp.float32)

    y = model_builder_forward(x, w, gamma, windowsize=WS, use_layernorm=True)
    y = jax.block_until_ready(y)

    y_ref = _reference(x, w, gamma, windowsize=WS, use_layernorm=True)
    assert y.shape == (N, F_IN, WS, C_IN), y.shape
    err = float(jnp.max(jnp.abs(y - y_ref)))
    # small slack for MXU accumulation-order differences vs the einsum ref
    assert jnp.allclose(y, y_ref, atol=5e-4, rtol=5e-4), err

    print("KERNEL_OK")
</pallas_src>

<mosaic_0001>
module attributes {stable_mosaic.version = 11 : i64} {
  func.func @_wavelet_kernel(%arg0: i32, %arg1: memref<16x16xf32, #tpu.memory_space<vmem>>, %arg2: memref<16x64xf32, #tpu.memory_space<vmem>>, %arg3: memref<64x64xf32, #tpu.memory_space<vmem>>, %arg4: memref<1x64xf32, #tpu.memory_space<vmem>>, %arg5: memref<16x64xf32, #tpu.memory_space<vmem>>) attributes {dimension_semantics = [#tpu.dimension_semantics<parallel>], iteration_bounds = array<i64: 1>, scalar_prefetch = 0 : i64, scratch_operands = 0 : i64, tpu.core_type = #tpu.core_type<tc>, window_params = [{transform_indices = @transform_0, window_bounds = array<i64: 16, 16>}, {pipeline_mode = #tpu.pipeline_mode<synchronous>, transform_indices = @transform_1, window_bounds = array<i64: 16, 64>}, {pipeline_mode = #tpu.pipeline_mode<synchronous>, transform_indices = @transform_2, window_bounds = array<i64: 64, 64>}, {pipeline_mode = #tpu.pipeline_mode<synchronous>, transform_indices = @transform_3, window_bounds = array<i64: 1, 64>}, {transform_indices = @transform_4, window_bounds = array<i64: 16, 64>}]} {
    %c0 = arith.constant 0 : index
    %c0_0 = arith.constant 0 : index
    %0 = vector.load %arg1[%c0, %c0_0] : memref<16x16xf32, #tpu.memory_space<vmem>>, vector<16x16xf32>
    %c0_1 = arith.constant 0 : index
    %c0_2 = arith.constant 0 : index
    %1 = vector.load %arg2[%c0_1, %c0_2] : memref<16x64xf32, #tpu.memory_space<vmem>>, vector<16x64xf32>
    %cst = arith.constant dense<0.000000e+00> : vector<16x64xf32>
    %2 = tpu.matmul %0, %1, %cst {dimension_numbers = #tpu.dot_dimension_numbers<[1], [0], [0], [1], [0, 0, 1, 1], [], []>} : vector<16x16xf32>, vector<16x64xf32>, vector<16x64xf32> -> vector<16x64xf32>
    %c0_3 = arith.constant 0 : index
    %c0_4 = arith.constant 0 : index
    %3 = vector.load %arg3[%c0_3, %c0_4] : memref<64x64xf32, #tpu.memory_space<vmem>>, vector<64x64xf32>
    %cst_5 = arith.constant dense<0.000000e+00> : vector<16x64xf32>
    %4 = tpu.matmul %2, %3, %cst_5 {dimension_numbers = #tpu.dot_dimension_numbers<[1], [0], [0], [1], [0, 0, 1, 1], [], []>} : vector<16x64xf32>, vector<64x64xf32>, vector<16x64xf32> -> vector<16x64xf32>
    %5 = arith.subf %2, %4 : vector<16x64xf32>
    %6 = arith.mulf %5, %5 : vector<16x64xf32>
    %cst_6 = arith.constant dense<0.000000e+00> : vector<16x64xf32>
    %7 = tpu.matmul %6, %3, %cst_6 {dimension_numbers = #tpu.dot_dimension_numbers<[1], [0], [0], [1], [0, 0, 1, 1], [], []>} : vector<16x64xf32>, vector<64x64xf32>, vector<16x64xf32> -> vector<16x64xf32>
    %cst_7 = arith.constant 9.99999974E-6 : f32
    %8 = vector.broadcast %cst_7 : f32 to vector<16x64xf32>
    %9 = arith.addf %7, %8 : vector<16x64xf32>
    %10 = math.rsqrt %9 : vector<16x64xf32>
    %11 = arith.mulf %5, %10 : vector<16x64xf32>
    %c0_8 = arith.constant 0 : index
    %c0_9 = arith.constant 0 : index
    %12 = vector.load %arg4[%c0_8, %c0_9] : memref<1x64xf32, #tpu.memory_space<vmem>>, vector<1x64xf32>
    %13 = vector.broadcast %12 : vector<1x64xf32> to vector<16x64xf32>
    %14 = arith.mulf %11, %13 : vector<16x64xf32>
    %c0_10 = arith.constant 0 : index
    %c0_11 = arith.constant 0 : index
    %15 = vector.load %arg5[%c0_10, %c0_11] : memref<16x64xf32, #tpu.memory_space<vmem>>, vector<16x64xf32>
    tpu.vector_store %arg5[%c0_10, %c0_11], %14 {strides = array<i32>} : memref<16x64xf32, #tpu.memory_space<vmem>>, vector<16x64xf32>,
    return
  }
  func.func @transform_0(%arg0: i32) -> (i32, i32) {
    %c0_i32 = arith.constant 0 : i32
    %c0_i32_0 = arith.constant 0 : i32
    return %arg0, %c0_i32 : i32, i32
  }
  func.func @transform_1(%arg0: i32) -> (i32, i32) {
    %c0_i32 = arith.constant 0 : i32
    %c0_i32_0 = arith.constant 0 : i32
    %c0_i32_1 = arith.constant 0 : i32
    return %c0_i32, %c0_i32_0 : i32, i32
  }
  func.func @transform_2(%arg0: i32) -> (i32, i32) {
    %c0_i32 = arith.constant 0 : i32
    %c0_i32_0 = arith.constant 0 : i32
    %c0_i32_1 = arith.constant 0 : i32
    return %c0_i32, %c0_i32_0 : i32, i32
  }
  func.func @transform_3(%arg0: i32) -> (i32, i32) {
    %c0_i32 = arith.constant 0 : i32
    %c0_i32_0 = arith.constant 0 : i32
    %c0_i32_1 = arith.constant 0 : i32
    return %c0_i32, %c0_i32_0 : i32, i32
  }
  func.func @transform_4(%arg0: i32) -> (i32, i32) {
    %c0_i32 = arith.constant 0 : i32
    %c0_i32_0 = arith.constant 0 : i32
    return %arg0, %c0_i32 : i32, i32
  }
}

</mosaic_0001>

<llo_original>
// kernel: model_builder_forward.1
$region0: #{model_builder_forward.1}
  #allocation0 [shape = 'u32[]', space=smem, size = 0x4, offset = 0x4, fixed_abs, tag = 'smem constant byte address 0x4 - core index']
  #allocation1 [shape = 'u32[144,128]{1,0:T(1,128)}', space=vmem, size = 0x12000, scoped, tag = 'internal scratch']
  %s0 = inlined_call_operand.vmem [shape: f32[16,16], index: 0, kind: input, shape index: {}]
  %s1 = inlined_call_operand.vmem [shape: f32[16,64], index: 1, kind: input, shape index: {}]
  %s2 = inlined_call_operand.vmem [shape: f32[64,64], index: 2, kind: input, shape index: {}]
  %s3 = inlined_call_operand.vmem [shape: f32[1,64], index: 3, kind: input, shape index: {}]
  %s4 = inlined_call_operand.vmem [shape: f32[16,64], index: 4, kind: output, shape index: {}]
  %s5 = sld [smem:[#allocation0]]
  $region26: #{model_builder_forward.1} parent=0
    _
  %s7 = ssub.s32 1, %s5
  %s8 = scalar_select 0, %s7, %s5
  // Predicated region
  $region2: #{model_builder_forward.1} parent=0 // pred_check
    _
  $region3: #{model_builder_forward.1} parent=0 // pred_check_branch
    %10 = sbr.rel (0) target = $region5
  $region4: #{model_builder_forward.1} parent=0 // pred_region
    _
  $region5: #{model_builder_forward.1} parent=0 // pred_fallthru
    _
  // Predicated region
  $region6: #{model_builder_forward.1} parent=0 // pred_check
    _
  $region7: #{model_builder_forward.1} parent=0 // pred_check_branch
    %12 = sbr.rel (0) target = $region9
  $region8: #{model_builder_forward.1} parent=0 // pred_region
    _
  $region9: #{model_builder_forward.1} parent=0 // pred_fallthru
    _
  // Predicated region
  $region10: #{model_builder_forward.1} parent=0 // pred_check
    _
  $region11: #{model_builder_forward.1} parent=0 // pred_check_branch
    %14 = sbr.rel (0) target = $region13
  $region12: #{model_builder_forward.1} parent=0 // pred_region
    _
  $region13: #{model_builder_forward.1} parent=0 // pred_fallthru
    _
  // Predicated region
  $region14: #{model_builder_forward.1} parent=0 // pred_check
    _
  $region15: #{model_builder_forward.1} parent=0 // pred_check_branch
    %16 = sbr.rel (0) target = $region17
  $region16: #{model_builder_forward.1} parent=0 // pred_region
    _
  $region17: #{model_builder_forward.1} parent=0 // pred_fallthru
    _
  %v17 = vld [vmem:[%s0] sm:$0xff]
  %v18 = vld [vmem:[%s0 + $0x8] sm:$0xff]
  %v19 = vld [vmem:[%s1] sm:$0xff]
  %v20 = vld [vmem:[%s1 + $0x8] sm:$0xff]
  %vm21 = vcmask 130048
  %v23 = vsel %vm21, %v17, 0
  %v26 = vsel %vm21, %v18, 0
  %28 = vmatprep.subr.mxu0 0.0
  %29 = vmatpush1.msra.mxu0 %v19
  %30 = vmatprep.subr.mxu0 0.0
  %31 = vmatpush1.msra.mxu0 %v20
  %32 = vmatprep.subr.mxu0 0.0
  %33 = vmatpush1.msra.mxu0 0.0
  %34 = vmatprep.subr.mxu0 0.0
  %35 = vmatpush1.msra.mxu0 0.0
  %36 = vmatprep.subr.mxu0 0.0
  %37 = vmatpush1.msra.mxu0 0.0
  %38 = vmatprep.subr.mxu0 0.0
  %39 = vmatpush1.msra.mxu0 0.0
  %40 = vmatprep.subr.mxu0 0.0
  %41 = vmatpush1.msra.mxu0 0.0
  %42 = vmatprep.subr.mxu0 0.0
  %43 = vmatpush1.msra.mxu0 0.0
  %44 = vmatprep.subr.mxu0 0.0
  %45 = vmatpush1.msra.mxu0 0.0
  %46 = vmatprep.subr.mxu0 0.0
  %47 = vmatpush1.msra.mxu0 0.0
  %48 = vmatprep.subr.mxu0 0.0
  %49 = vmatpush1.msra.mxu0 0.0
  %50 = vmatprep.subr.mxu0 0.0
  %51 = vmatpush1.msra.mxu0 0.0
  %52 = vmatprep.subr.mxu0 0.0
  %53 = vmatpush1.msra.mxu0 0.0
  %54 = vmatprep.subr.mxu0 0.0
  %55 = vmatpush1.msra.mxu0 0.0
  %56 = vmatprep.subr.mxu0 0.0
  %57 = vmatpush1.msra.mxu0 0.0
  %58 = vmatprep.subr.mxu0 0.0
  %59 = vmatpush1.msra.mxu0 0.0
  %60 = vmatprep.subr.mxu0 0.0
  %61 = vmatpush1.msra.mxu0 0.0
  %62 = vmatprep.subr.mxu0 0.0
  %63 = vmatpush1.msra.mxu0 0.0
  %64 = vmatprep.subr.mxu0 0.0
  %65 = vmatpush1.msra.mxu0 0.0
  %66 = vmatprep.subr.mxu0 0.0
  %67 = vmatpush1.msra.mxu0 0.0
  %68 = vmatprep.subr.mxu0 0.0
  %69 = vmatpush1.msra.mxu0 0.0
  %70 = vmatprep.subr.mxu0 0.0
  %71 = vmatpush1.msra.mxu0 0.0
  %72 = vmatprep.subr.mxu0 0.0
  %73 = vmatpush1.msra.mxu0 0.0
  %74 = vmatprep.subr.mxu0 0.0
  %75 = vmatpush1.msra.mxu0 0.0
  %76 = vmatprep.subr.mxu0 0.0
  %77 = vmatpush1.msra.mxu0 0.0
  %78 = vmatprep.subr.mxu0 0.0
  %79 = vmatpush1.msra.mxu0 0.0
  %80 = vmatprep.subr.mxu0 0.0
  %81 = vmatpush1.msra.mxu0 0.0
  %82 = vmatprep.subr.mxu0 0.0
  %83 = vmatpush1.msra.mxu0 0.0
  %84 = vmatprep.subr.mxu0 0.0
  %85 = vmatpush1.msra.mxu0 0.0
  %86 = vmatprep.subr.mxu0 0.0
  %87 = vmatpush1.msra.mxu0 0.0
  %88 = vmatprep.subr.mxu0 0.0
  %89 = vmatpush1.msra.mxu0 0.0
  %90 = vmatprep.subr.mxu0 0.0
  %91 = vmatpush1.msra.mxu0 0.0
  %92 = vmatprep.mubr.f32.mxu0 0.0
  %93 = vmatmul.mubr.f32.gmra.mrb[0].mxu0 %v23
  %v94 = vpop.f32.mrb[0].mxu0
  %v95 = vadd.f32 0.0, %v94
  %v96 = vpop.f32.mrb[0].mxu0
  %97 = vmatprep.mubr.f32.mxu0 0.0
  %98 = vmatmul.mubr.f32.gmra.mrb[0].mxu0 %v26
  %v99 = vpop.f32.mrb[0].mxu0
  %v100 = vadd.f32 0.0, %v99
  %v101 = vpop.f32.mrb[0].mxu0
  %102 = vdwg.mxu0
  %v103 = vld [vmem:[%s2] sm:$0xff]
  %v104 = vld [vmem:[%s2 + $0x8] sm:$0xff]
  %v105 = vld [vmem:[%s2 + $0x10] sm:$0xff]
  %v106 = vld [vmem:[%s2 + $0x18] sm:$0xff]
  %v107 = vld [vmem:[%s2 + $0x20] sm:$0xff]
  %v108 = vld [vmem:[%s2 + $0x28] sm:$0xff]
  %v109 = vld [vmem:[%s2 + $0x30] sm:$0xff]
  %v110 = vld [vmem:[%s2 + $0x38] sm:$0xff]
  %vm111 = vcmask 523264
  %v113 = vsel %vm111, %v95, 0
  %v116 = vsel %vm111, %v100, 0
  %118 = vmatprep.subr.mxu0 0.0
  %119 = vmatpush1.msra.mxu0 %v103
  %120 = vmatprep.subr.mxu0 0.0
  %121 = vmatpush1.msra.mxu0 %v104
  %122 = vmatprep.subr.mxu0 0.0
  %123 = vmatpush1.msra.mxu0 %v105
  %124 = vmatprep.subr.mxu0 0.0
  %125 = vmatpush1.msra.mxu0 %v106
  %126 = vmatprep.subr.mxu0 0.0
  %127 = vmatpush1.msra.mxu0 %v107
  %128 = vmatprep.subr.mxu0 0.0
  %129 = vmatpush1.msra.mxu0 %v108
  %130 = vmatprep.subr.mxu0 0.0
  %131 = vmatpush1.msra.mxu0 %v109
  %132 = vmatprep.subr.mxu0 0.0
  %133 = vmatpush1.msra.mxu0 %v110
  %134 = vmatprep.subr.mxu0 0.0
  %135 = vmatpush1.msra.mxu0 0.0
  %136 = vmatprep.subr.mxu0 0.0
  %137 = vmatpush1.msra.mxu0 0.0
  %138 = vmatprep.subr.mxu0 0.0
  %139 = vmatpush1.msra.mxu0 0.0
  %140 = vmatprep.subr.mxu0 0.0
  %141 = vmatpush1.msra.mxu0 0.0
  %142 = vmatprep.subr.mxu0 0.0
  %143 = vmatpush1.msra.mxu0 0.0
  %144 = vmatprep.subr.mxu0 0.0
  %145 = vmatpush1.msra.mxu0 0.0
  %146 = vmatprep.subr.mxu0 0.0
  %147 = vmatpush1.msra.mxu0 0.0
  %148 = vmatprep.subr.mxu0 0.0
  %149 = vmatpush1.msra.mxu0 0.0
  %150 = vmatprep.subr.mxu0 0.0
  %151 = vmatpush1.msra.mxu0 0.0
  %152 = vmatprep.subr.mxu0 0.0
  %153 = vmatpush1.msra.mxu0 0.0
  %154 = vmatprep.subr.mxu0 0.0
  %155 = vmatpush1.msra.mxu0 0.0
  %156 = vmatprep.subr.mxu0 0.0
  %157 = vmatpush1.msra.mxu0 0.0
  %158 = vmatprep.subr.mxu0 0.0
  %159 = vmatpush1.msra.mxu0 0.0
  %160 = vmatprep.subr.mxu0 0.0
  %161 = vmatpush1.msra.mxu0 0.0
  %162 = vmatprep.subr.mxu0 0.0
  %163 = vmatpush1.msra.mxu0 0.0
  %164 = vmatprep.subr.mxu0 0.0
  %165 = vmatpush1.msra.mxu0 0.0
  %166 = vmatprep.subr.mxu0 0.0
  %167 = vmatpush1.msra.mxu0 0.0
  %168 = vmatprep.subr.mxu0 0.0
  %169 = vmatpush1.msra.mxu0 0.0
  %170 = vmatprep.subr.mxu0 0.0
  %171 = vmatpush1.msra.mxu0 0.0
  %172 = vmatprep.subr.mxu0 0.0
  %173 = vmatpush1.msra.mxu0 0.0
  %174 = vmatprep.subr.mxu0 0.0
  %175 = vmatpush1.msra.mxu0 0.0
  %176 = vmatprep.subr.mxu0 0.0
  %177 = vmatpush1.msra.mxu0 0.0
  %178 = vmatprep.subr.mxu0 0.0
  %179 = vmatpush1.msra.mxu0 0.0
  %180 = vmatprep.subr.mxu0 0.0
  %181 = vmatpush1.msra.mxu0 0.0
  %182 = vmatprep.mubr.f32.mxu0 0.0
  %183 = vmatmul.mubr.f32.gmra.mrb[0].mxu0 %v113
  %v184 = vpop.f32.mrb[0].mxu0
  %v185 = vadd.f32 0.0, %v184
  %v186 = vpop.f32.mrb[0].mxu0
  %187 = vmatprep.mubr.f32.mxu0 0.0
  %188 = vmatmul.mubr.f32.gmra.mrb[0].mxu0 %v116
  %v189 = vpop.f32.mrb[0].mxu0
  %v190 = vadd.f32 0.0, %v189
  %v191 = vpop.f32.mrb[0].mxu0
  %192 = vdwg.mxu0
  %v193 = vsub.f32 %v95, %v185
  %v194 = vsub.f32 %v100, %v190
  %v195 = vmul.f32 %v193, %v193
  %v196 = vmul.f32 %v194, %v194
  %v198 = vsel %vm111, %v195, 0
  %v201 = vsel %vm111, %v196, 0
  %203 = vmatprep.subr.mxu0 0.0
  %204 = vmatpush1.msra.mxu0 %v103
  %205 = vmatprep.subr.mxu0 0.0
  %206 = vmatpush1.msra.mxu0 %v104
  %207 = vmatprep.subr.mxu0 0.0
  %208 = vmatpush1.msra.mxu0 %v105
  %209 = vmatprep.subr.mxu0 0.0
  %210 = vmatpush1.msra.mxu0 %v106
  %211 = vmatprep.subr.mxu0 0.0
  %212 = vmatpush1.msra.mxu0 %v107
  %213 = vmatprep.subr.mxu0 0.0
  %214 = vmatpush1.msra.mxu0 %v108
  %215 = vmatprep.subr.mxu0 0.0
  %216 = vmatpush1.msra.mxu0 %v109
  %217 = vmatprep.subr.mxu0 0.0
  %218 = vmatpush1.msra.mxu0 %v110
  %219 = vmatprep.subr.mxu0 0.0
  %220 = vmatpush1.msra.mxu0 0.0
  %221 = vmatprep.subr.mxu0 0.0
  %222 = vmatpush1.msra.mxu0 0.0
  %223 = vmatprep.subr.mxu0 0.0
  %224 = vmatpush1.msra.mxu0 0.0
  %225 = vmatprep.subr.mxu0 0.0
  %226 = vmatpush1.msra.mxu0 0.0
  %227 = vmatprep.subr.mxu0 0.0
  %228 = vmatpush1.msra.mxu0 0.0
  %229 = vmatprep.subr.mxu0 0.0
  %230 = vmatpush1.msra.mxu0 0.0
  %231 = vmatprep.subr.mxu0 0.0
  %232 = vmatpush1.msra.mxu0 0.0
  %233 = vmatprep.subr.mxu0 0.0
  %234 = vmatpush1.msra.mxu0 0.0
  %235 = vmatprep.subr.mxu0 0.0
  %236 = vmatpush1.msra.mxu0 0.0
  %237 = vmatprep.subr.mxu0 0.0
  %238 = vmatpush1.msra.mxu0 0.0
  %239 = vmatprep.subr.mxu0 0.0
  %240 = vmatpush1.msra.mxu0 0.0
  %241 = vmatprep.subr.mxu0 0.0
  %242 = vmatpush1.msra.mxu0 0.0
  %243 = vmatprep.subr.mxu0 0.0
  %244 = vmatpush1.msra.mxu0 0.0
  %245 = vmatprep.subr.mxu0 0.0
  %246 = vmatpush1.msra.mxu0 0.0
  %247 = vmatprep.subr.mxu0 0.0
  %248 = vmatpush1.msra.mxu0 0.0
  %249 = vmatprep.subr.mxu0 0.0
  %250 = vmatpush1.msra.mxu0 0.0
  %251 = vmatprep.subr.mxu0 0.0
  %252 = vmatpush1.msra.mxu0 0.0
  %253 = vmatprep.subr.mxu0 0.0
  %254 = vmatpush1.msra.mxu0 0.0
  %255 = vmatprep.subr.mxu0 0.0
  %256 = vmatpush1.msra.mxu0 0.0
  %257 = vmatprep.subr.mxu0 0.0
  %258 = vmatpush1.msra.mxu0 0.0
  %259 = vmatprep.subr.mxu0 0.0
  %260 = vmatpush1.msra.mxu0 0.0
  %261 = vmatprep.subr.mxu0 0.0
  %262 = vmatpush1.msra.mxu0 0.0
  %263 = vmatprep.subr.mxu0 0.0
  %264 = vmatpush1.msra.mxu0 0.0
  %265 = vmatprep.subr.mxu0 0.0
  %266 = vmatpush1.msra.mxu0 0.0
  %267 = vmatprep.mubr.f32.mxu0 0.0
  %268 = vmatmul.mubr.f32.gmra.mrb[0].mxu0 %v198
  %v269 = vpop.f32.mrb[0].mxu0
  %v270 = vadd.f32 1e-05, %v269
  %v271 = vpop.f32.mrb[0].mxu0
  %272 = vmatprep.mubr.f32.mxu0 0.0
  %273 = vmatmul.mubr.f32.gmra.mrb[0].mxu0 %v201
  %v274 = vpop.f32.mrb[0].mxu0
  %v275 = vadd.f32 1e-05, %v274
  %v276 = vpop.f32.mrb[0].mxu0
  %277 = vdwg.mxu0
  %v278 = vrsqrt.pop %v270
  %v279 = vrsqrt.pop %v275
  %v280 = vmul.f32 %v193, %v278
  %v281 = vmul.f32 %v194, %v279
  %v282 = vld [vmem:[%s3] sm:$0x1]
  %v284 = vlaneseq
  %v285 = vshrl.u32 %v284, 7
  %v286 = vsub.s32 0, %v285
  %v287 = vrot.slane %v282, %v286
  %v289 = vmul.f32 %v280, %v287
  %v290 = vmul.f32 %v281, %v287
  %291 = vst.msk [vmem:[%s4] sm:$0xff] %vm111, %v289
  %292 = vst.msk [vmem:[%s4 + $0x8] sm:$0xff] %vm111, %v290
  // Predicated region
  $region18: #{model_builder_forward.1} parent=0 // pred_check
    _
  $region19: #{model_builder_forward.1} parent=0 // pred_check_branch
    %294 = sbr.rel (0) target = $region21
  $region20: #{model_builder_forward.1} parent=0 // pred_region
    _
  $region21: #{model_builder_forward.1} parent=0 // pred_fallthru
    _
  // Predicated region
  $region22: #{model_builder_forward.1} parent=0 // pred_check
    _
  $region23: #{model_builder_forward.1} parent=0 // pred_check_branch
    %296 = sbr.rel (0) target = $region25
  $region24: #{model_builder_forward.1} parent=0 // pred_region
    _
  $region25: #{model_builder_forward.1} parent=0 // pred_fallthru
    _

</llo_original>
